<compile_context>
chip_gen: v7x
topology: tpu7x:2x2x1
jax: 0.10.0
libtpu: 0.0.40
codegen_flags: <defaults>
</compile_context>

<pallas_src>
import jax
import jax.numpy as jnp
from jax.experimental import pallas as pl
from jax.experimental.pallas import tpu as pltpu

IN_DIM = 4
HID = 128
OUT_DIM = 2


def _round_up(n, m):
    return ((n + m - 1) // m) * m


def qnet_kernel(x_ref, w1_ref, b1_ref, w2_ref, b2_ref, w3_ref, b3_ref, o_ref):
    x = x_ref[...]                       # (TB, 4)   f32
    w1 = w1_ref[...]                     # (4, 128)  f32

    # ---- layer 1 on the VPU: y = x @ W1 + b1 as four broadcast FMAs ----
    h1 = (b1_ref[...]
          + x[:, 0:1] * w1[0:1, :]
          + x[:, 1:2] * w1[1:2, :]
          + x[:, 2:3] * w1[2:3, :]
          + x[:, 3:4] * w1[3:4, :])      # (TB, 128) f32
    h1 = jnp.maximum(h1, 0.0)

    # ---- layers 2 / 3 on the MXU: bf16 operands, f32 accumulation ----
    h2 = jnp.dot(h1.astype(jnp.bfloat16), w2_ref[...],
                 preferred_element_type=jnp.float32) + b2_ref[...]
    h2 = jnp.maximum(h2, 0.0)

    # TODO(synk): if profiling ever shows the masked 2-lane output store is the
    # binder at very large TB, pad w3/b3 to 128 lanes and slice outside.
    o_ref[...] = jnp.dot(h2.astype(jnp.bfloat16), w3_ref[...],
                         preferred_element_type=jnp.float32) + b3_ref[...]


def qnet_forward(x, params, *, block_b=512):
    """Forward pass of Qnet.  x: (B, 4) f32  ->  (B, 2) f32."""
    w1, b1, w2, b2, w3, b3 = params
    B = x.shape[0]

    # Batch tile: multiple of 8 (sublane), capped at block_b; pad B up to a
    # whole number of tiles (zero rows are cheap and keep blocks aligned).
    tb = min(block_b, _round_up(B, 8))
    b_pad = _round_up(B, tb)
    if b_pad != B:
        x = jnp.pad(x, ((0, b_pad - B), (0, 0)))
    grid = (b_pad // tb,)

    # MXU operands in bf16 (one-time cast; also halves resident weight bytes).
    w2b = w2.astype(jnp.bfloat16)
    w3b = w3.astype(jnp.bfloat16)

    batch_spec = lambda cols: pl.BlockSpec((tb, cols), lambda i: (i, 0))
    resident = lambda shape: pl.BlockSpec(shape, lambda i: (0, 0))

    out = pl.pallas_call(
        qnet_kernel,
        out_shape=jax.ShapeDtypeStruct((b_pad, OUT_DIM), jnp.float32),
        grid=grid,
        in_specs=[
            batch_spec(IN_DIM),          # x   (TB, 4)
            resident((IN_DIM, HID)),     # w1  (4, 128)   f32
            resident((1, HID)),          # b1  (1, 128)   f32
            resident((HID, HID)),        # w2  (128, 128) bf16
            resident((1, HID)),          # b2  (1, 128)   f32
            resident((HID, OUT_DIM)),    # w3  (128, 2)   bf16
            resident((1, OUT_DIM)),      # b3  (1, 2)     f32
        ],
        out_specs=batch_spec(OUT_DIM),
        compiler_params=pltpu.CompilerParams(
            dimension_semantics=("parallel",)),   # v7x: both TensorCores
    )(x, w1, b1, w2b, b2, w3b, b3)

    return out[:B]


def init_params(key):
    # Deterministic PyTorch-Linear-style init: U(-1/sqrt(fan_in), 1/sqrt(fan_in)).
    k1, k2, k3, k4, k5, k6 = jax.random.split(key, 6)

    def lin(kw, kb, fan_in, fan_out):
        bound = 1.0 / jnp.sqrt(fan_in)
        w = jax.random.uniform(kw, (fan_in, fan_out), jnp.float32, -bound, bound)
        b = jax.random.uniform(kb, (1, fan_out), jnp.float32, -bound, bound)
        return w, b

    w1, b1 = lin(k1, k2, IN_DIM, HID)
    w2, b2 = lin(k3, k4, HID, HID)
    w3, b3 = lin(k5, k6, HID, OUT_DIM)
    return (w1, b1, w2, b2, w3, b3)


def reference_forward(x, params):
    # Pure f32 JAX reference (kernel uses bf16 MXU operands -> loose tolerance).
    w1, b1, w2, b2, w3, b3 = params
    h1 = jnp.maximum(x @ w1 + b1, 0.0)
    h2 = jnp.maximum(h1 @ w2 + b2, 0.0)
    return h2 @ w3 + b3


if __name__ == "__main__":
    key = jax.random.PRNGKey(0)
    kp, kx = jax.random.split(key)

    params = init_params(kp)
    B = 256                       # small batch; block_b=128 -> 2-step pipelined grid
    x = jax.random.normal(kx, (B, IN_DIM), jnp.float32)

    out = qnet_forward(x, params, block_b=128)
    out = jax.block_until_ready(out)

    ref = reference_forward(x, params)
    assert out.shape == (B, OUT_DIM)
    # bf16 MXU operands with f32 accumulation -> relaxed tolerance vs f32 ref.
    assert jnp.allclose(out, ref, atol=3e-2, rtol=3e-2), "mismatch vs pure-JAX reference"

    print("KERNEL_OK")
</pallas_src>

<mosaic_0001>
module attributes {stable_mosaic.version = 11 : i64} {
  func.func @qnet_kernel(%arg0: i32, %arg1: memref<128x4xf32, #tpu.memory_space<vmem>>, %arg2: memref<4x128xf32, #tpu.memory_space<vmem>>, %arg3: memref<1x128xf32, #tpu.memory_space<vmem>>, %arg4: memref<128x128xbf16, #tpu.memory_space<vmem>>, %arg5: memref<1x128xf32, #tpu.memory_space<vmem>>, %arg6: memref<128x2xbf16, #tpu.memory_space<vmem>>, %arg7: memref<1x2xf32, #tpu.memory_space<vmem>>, %arg8: memref<128x2xf32, #tpu.memory_space<vmem>>) attributes {dimension_semantics = [#tpu.dimension_semantics<parallel>], iteration_bounds = array<i64: 2>, scalar_prefetch = 0 : i64, scratch_operands = 0 : i64, tpu.core_type = #tpu.core_type<tc>, window_params = [{transform_indices = @transform_0, window_bounds = array<i64: 128, 4>}, {pipeline_mode = #tpu.pipeline_mode<synchronous>, transform_indices = @transform_1, window_bounds = array<i64: 4, 128>}, {pipeline_mode = #tpu.pipeline_mode<synchronous>, transform_indices = @transform_2, window_bounds = array<i64: 1, 128>}, {pipeline_mode = #tpu.pipeline_mode<synchronous>, transform_indices = @transform_3, window_bounds = array<i64: 128, 128>}, {pipeline_mode = #tpu.pipeline_mode<synchronous>, transform_indices = @transform_4, window_bounds = array<i64: 1, 128>}, {pipeline_mode = #tpu.pipeline_mode<synchronous>, transform_indices = @transform_5, window_bounds = array<i64: 128, 2>}, {pipeline_mode = #tpu.pipeline_mode<synchronous>, transform_indices = @transform_6, window_bounds = array<i64: 1, 2>}, {transform_indices = @transform_7, window_bounds = array<i64: 128, 2>}]} {
    %c0 = arith.constant 0 : index
    %c0_0 = arith.constant 0 : index
    %0 = vector.load %arg1[%c0, %c0_0] : memref<128x4xf32, #tpu.memory_space<vmem>>, vector<128x4xf32>
    %c0_1 = arith.constant 0 : index
    %c0_2 = arith.constant 0 : index
    %1 = vector.load %arg2[%c0_1, %c0_2] : memref<4x128xf32, #tpu.memory_space<vmem>>, vector<4x128xf32>
    %c0_3 = arith.constant 0 : index
    %c0_4 = arith.constant 0 : index
    %2 = vector.load %arg3[%c0_3, %c0_4] : memref<1x128xf32, #tpu.memory_space<vmem>>, vector<1x128xf32>
    %3 = vector.extract_strided_slice %0 {offsets = [0, 0], sizes = [128, 1], strides = [1, 1]} : vector<128x4xf32> to vector<128x1xf32>
    %4 = vector.extract_strided_slice %1 {offsets = [0, 0], sizes = [1, 128], strides = [1, 1]} : vector<4x128xf32> to vector<1x128xf32>
    %5 = vector.broadcast %3 : vector<128x1xf32> to vector<128x128xf32>
    %6 = vector.broadcast %4 : vector<1x128xf32> to vector<128x128xf32>
    %7 = arith.mulf %5, %6 : vector<128x128xf32>
    %8 = vector.broadcast %2 : vector<1x128xf32> to vector<128x128xf32>
    %9 = arith.addf %8, %7 : vector<128x128xf32>
    %10 = vector.extract_strided_slice %0 {offsets = [0, 1], sizes = [128, 1], strides = [1, 1]} : vector<128x4xf32> to vector<128x1xf32>
    %11 = vector.extract_strided_slice %1 {offsets = [1, 0], sizes = [1, 128], strides = [1, 1]} : vector<4x128xf32> to vector<1x128xf32>
    %12 = vector.broadcast %10 : vector<128x1xf32> to vector<128x128xf32>
    %13 = vector.broadcast %11 : vector<1x128xf32> to vector<128x128xf32>
    %14 = arith.mulf %12, %13 : vector<128x128xf32>
    %15 = arith.addf %9, %14 : vector<128x128xf32>
    %16 = vector.extract_strided_slice %0 {offsets = [0, 2], sizes = [128, 1], strides = [1, 1]} : vector<128x4xf32> to vector<128x1xf32>
    %17 = vector.extract_strided_slice %1 {offsets = [2, 0], sizes = [1, 128], strides = [1, 1]} : vector<4x128xf32> to vector<1x128xf32>
    %18 = vector.broadcast %16 : vector<128x1xf32> to vector<128x128xf32>
    %19 = vector.broadcast %17 : vector<1x128xf32> to vector<128x128xf32>
    %20 = arith.mulf %18, %19 : vector<128x128xf32>
    %21 = arith.addf %15, %20 : vector<128x128xf32>
    %22 = vector.extract_strided_slice %0 {offsets = [0, 3], sizes = [128, 1], strides = [1, 1]} : vector<128x4xf32> to vector<128x1xf32>
    %23 = vector.extract_strided_slice %1 {offsets = [3, 0], sizes = [1, 128], strides = [1, 1]} : vector<4x128xf32> to vector<1x128xf32>
    %24 = vector.broadcast %22 : vector<128x1xf32> to vector<128x128xf32>
    %25 = vector.broadcast %23 : vector<1x128xf32> to vector<128x128xf32>
    %26 = arith.mulf %24, %25 : vector<128x128xf32>
    %27 = arith.addf %21, %26 : vector<128x128xf32>
    %cst = arith.constant 0.000000e+00 : f32
    %28 = vector.broadcast %cst : f32 to vector<128x128xf32>
    %29 = arith.maximumf %27, %28 : vector<128x128xf32>
    %30 = arith.truncf %29 : vector<128x128xf32> to vector<128x128xbf16>
    %c0_5 = arith.constant 0 : index
    %c0_6 = arith.constant 0 : index
    %31 = vector.load %arg4[%c0_5, %c0_6] : memref<128x128xbf16, #tpu.memory_space<vmem>>, vector<128x128xbf16>
    %cst_7 = arith.constant dense<0.000000e+00> : vector<128x128xf32>
    %32 = tpu.matmul %30, %31, %cst_7 {dimension_numbers = #tpu.dot_dimension_numbers<[1], [0], [0], [1], [0, 0, 1, 1], [], []>} : vector<128x128xbf16>, vector<128x128xbf16>, vector<128x128xf32> -> vector<128x128xf32>
    %c0_8 = arith.constant 0 : index
    %c0_9 = arith.constant 0 : index
    %33 = vector.load %arg5[%c0_8, %c0_9] : memref<1x128xf32, #tpu.memory_space<vmem>>, vector<1x128xf32>
    %34 = vector.broadcast %33 : vector<1x128xf32> to vector<128x128xf32>
    %35 = arith.addf %32, %34 : vector<128x128xf32>
    %cst_10 = arith.constant 0.000000e+00 : f32
    %36 = vector.broadcast %cst_10 : f32 to vector<128x128xf32>
    %37 = arith.maximumf %35, %36 : vector<128x128xf32>
    %38 = arith.truncf %37 : vector<128x128xf32> to vector<128x128xbf16>
    %c0_11 = arith.constant 0 : index
    %c0_12 = arith.constant 0 : index
    %39 = vector.load %arg6[%c0_11, %c0_12] : memref<128x2xbf16, #tpu.memory_space<vmem>>, vector<128x2xbf16>
    %cst_13 = arith.constant dense<0.000000e+00> : vector<128x2xf32>
    %40 = tpu.matmul %38, %39, %cst_13 {dimension_numbers = #tpu.dot_dimension_numbers<[1], [0], [0], [1], [0, 0, 1, 1], [], []>} : vector<128x128xbf16>, vector<128x2xbf16>, vector<128x2xf32> -> vector<128x2xf32>
    %c0_14 = arith.constant 0 : index
    %c0_15 = arith.constant 0 : index
    %41 = vector.load %arg7[%c0_14, %c0_15] : memref<1x2xf32, #tpu.memory_space<vmem>>, vector<1x2xf32>
    %42 = vector.broadcast %41 : vector<1x2xf32> to vector<128x2xf32>
    %43 = arith.addf %40, %42 : vector<128x2xf32>
    %c0_16 = arith.constant 0 : index
    %c0_17 = arith.constant 0 : index
    %44 = vector.load %arg8[%c0_16, %c0_17] : memref<128x2xf32, #tpu.memory_space<vmem>>, vector<128x2xf32>
    tpu.vector_store %arg8[%c0_16, %c0_17], %43 {strides = array<i32>} : memref<128x2xf32, #tpu.memory_space<vmem>>, vector<128x2xf32>,
    return
  }
  func.func @transform_0(%arg0: i32) -> (i32, i32) {
    %c0_i32 = arith.constant 0 : i32
    %c0_i32_0 = arith.constant 0 : i32
    return %arg0, %c0_i32 : i32, i32
  }
  func.func @transform_1(%arg0: i32) -> (i32, i32) {
    %c0_i32 = arith.constant 0 : i32
    %c0_i32_0 = arith.constant 0 : i32
    %c0_i32_1 = arith.constant 0 : i32
    return %c0_i32, %c0_i32_0 : i32, i32
  }
  func.func @transform_2(%arg0: i32) -> (i32, i32) {
    %c0_i32 = arith.constant 0 : i32
    %c0_i32_0 = arith.constant 0 : i32
    %c0_i32_1 = arith.constant 0 : i32
    return %c0_i32, %c0_i32_0 : i32, i32
  }
  func.func @transform_3(%arg0: i32) -> (i32, i32) {
    %c0_i32 = arith.constant 0 : i32
    %c0_i32_0 = arith.constant 0 : i32
    %c0_i32_1 = arith.constant 0 : i32
    return %c0_i32, %c0_i32_0 : i32, i32
  }
  func.func @transform_4(%arg0: i32) -> (i32, i32) {
    %c0_i32 = arith.constant 0 : i32
    %c0_i32_0 = arith.constant 0 : i32
    %c0_i32_1 = arith.constant 0 : i32
    return %c0_i32, %c0_i32_0 : i32, i32
  }
  func.func @transform_5(%arg0: i32) -> (i32, i32) {
    %c0_i32 = arith.constant 0 : i32
    %c0_i32_0 = arith.constant 0 : i32
    %c0_i32_1 = arith.constant 0 : i32
    return %c0_i32, %c0_i32_0 : i32, i32
  }
  func.func @transform_6(%arg0: i32) -> (i32, i32) {
    %c0_i32 = arith.constant 0 : i32
    %c0_i32_0 = arith.constant 0 : i32
    %c0_i32_1 = arith.constant 0 : i32
    return %c0_i32, %c0_i32_0 : i32, i32
  }
  func.func @transform_7(%arg0: i32) -> (i32, i32) {
    %c0_i32 = arith.constant 0 : i32
    %c0_i32_0 = arith.constant 0 : i32
    return %arg0, %c0_i32 : i32, i32
  }
}

</mosaic_0001>

<llo_original>
// kernel: tpu_custom_call.1
$region0: #{tpu_custom_call.1}
  #allocation0 [shape = 'u32[]', space=smem, size = 0x4, offset = 0x4, fixed_abs, tag = 'smem constant byte address 0x4 - core index']
  #allocation1 [shape = 'u32[144,128]{1,0:T(1,128)}', space=vmem, size = 0x12000, scoped, tag = 'internal scratch']
  %s0 = inlined_call_operand.vmem [shape: f32[256,4], index: 0, kind: input, shape index: {}]
  %s1 = inlined_call_operand.vmem [shape: f32[4,128], index: 1, kind: input, shape index: {}]
  %s2 = inlined_call_operand.vmem [shape: f32[1,128], index: 2, kind: input, shape index: {}]
  %s3 = inlined_call_operand.vmem [shape: bf16[128,128], index: 3, kind: input, shape index: {}]
  %s4 = inlined_call_operand.vmem [shape: f32[1,128], index: 4, kind: input, shape index: {}]
  %s5 = inlined_call_operand.vmem [shape: bf16[128,2], index: 5, kind: input, shape index: {}]
  %s6 = inlined_call_operand.vmem [shape: f32[1,2], index: 6, kind: input, shape index: {}]
  %s7 = inlined_call_operand.vmem [shape: f32[256,2], index: 7, kind: output, shape index: {}]
  %s8 = sld [smem:[#allocation0]]
  $region61: #{tpu_custom_call.1} parent=0
    _
  %s10 = ssub.s32 1, %s8
  %s11 = scalar_select 0, %s10, %s8
  loop: start=0, step=1, limit=4
  $region2: #{tpu_custom_call.1} parent=0 // loop_pre_header
    _
  $region3: #{tpu_custom_call.1} parent=0 // loop_header
    %s13 = sphi 0, %s17
    %p14 = scmp.ge.s32.totalorder %s13, 4
    %s23 = sphi 0, %s25
    %s26 = sphi 0, %s23
    %s27 = sphi 0, %s26
    %s43 = sphi 0, %s27
    %s47 = sphi 0, %s47
    %s49 = sphi 0, %s47
    %s50 = sphi 0, %s49
    %s64 = sphi 0, %s50
    %s68 = sphi 0, %s68
    %s70 = sphi 0, %s68
    %s71 = sphi 0, %s70
    %s85 = sphi 0, %s71
    %s89 = sphi 0, %s89
    %s91 = sphi 0, %s89
    %s92 = sphi 0, %s91
    %s106 = sphi 0, %s92
    %s110 = sphi 0, %s110
    %s112 = sphi 0, %s110
    %s113 = sphi 0, %s112
    %s127 = sphi 0, %s113
    %s131 = sphi 0, %s131
    %s133 = sphi 0, %s131
    %s134 = sphi 0, %s133
    %s148 = sphi 0, %s134
    %s152 = sphi 0, %s152
    %s154 = sphi 0, %s152
    %s155 = sphi 0, %s154
    %s169 = sphi 0, %s155
    %s175 = sphi 0, %s177
    %s178 = sphi 0, %s175
    %s179 = sphi 0, %s178
    %s195 = sphi 0, %s179
  $region4: #{tpu_custom_call.1} parent=0 // loop_header_branch
    %16 = sbr.rel (%p14) target = $region8
  $region5: #{tpu_custom_call.1} parent=0 // loop_body
    %s18 = ssub.s32 %s13, 1
    %s19 = ssub.s32 %s13, 2
    %s20 = sadd.s32 %s13, 1
    %s21 = ssub.s32 %s13, %s20
    %p22 = scmp.eq.s32.totalorder %s21, 0
    %s24 = sadd.s32 %s23, 1
    %s25 = scalar_select %p22, %s23, %s24
    %p28 = pneg %p22
    %p29 = scmp.eq.s32.totalorder %s13, 1
    %p30 = por %p28, %p29
    %p31 = scmp.ne.s32.totalorder %s23, %s26
    %p32 = scmp.eq.s32.totalorder %s13, 0
    %p33 = por %p31, %p32
    %p34 = scmp.ne.s32.totalorder %s23, %s26
    %p35 = scmp.eq.s32.totalorder %s18, 1
    %p36 = por %p34, %p35
    %p37 = scmp.ne.s32.totalorder %s26, %s27
    %p38 = scmp.eq.s32.totalorder %s18, 0
    %p39 = por %p37, %p38
    %p40 = scmp.ne.s32.totalorder %s26, %s27
    %p41 = scmp.eq.s32.totalorder %s19, 1
    %p42 = por %p40, %p41
    %p44 = scmp.ne.s32.totalorder %s27, %s43
    %p45 = scmp.eq.s32.totalorder %s19, 0
    %p46 = por %p44, %p45
    %s48 = sadd.s32 %s47, 1
    %p51 = scmp.eq.s32.totalorder %s13, 1
    %p52 = scmp.ne.s32.totalorder %s47, %s49
    %p53 = scmp.eq.s32.totalorder %s13, 0
    %p54 = por %p52, %p53
    %p55 = scmp.ne.s32.totalorder %s47, %s49
    %p56 = scmp.eq.s32.totalorder %s18, 1
    %p57 = por %p55, %p56
    %p58 = scmp.ne.s32.totalorder %s49, %s50
    %p59 = scmp.eq.s32.totalorder %s18, 0
    %p60 = por %p58, %p59
    %p61 = scmp.ne.s32.totalorder %s49, %s50
    %p62 = scmp.eq.s32.totalorder %s19, 1
    %p63 = por %p61, %p62
    %p65 = scmp.ne.s32.totalorder %s50, %s64
    %p66 = scmp.eq.s32.totalorder %s19, 0
    %p67 = por %p65, %p66
    %s69 = sadd.s32 %s68, 1
    %p72 = scmp.eq.s32.totalorder %s13, 1
    %p73 = scmp.ne.s32.totalorder %s68, %s70
    %p74 = scmp.eq.s32.totalorder %s13, 0
    %p75 = por %p73, %p74
    %p76 = scmp.ne.s32.totalorder %s68, %s70
    %p77 = scmp.eq.s32.totalorder %s18, 1
    %p78 = por %p76, %p77
    %p79 = scmp.ne.s32.totalorder %s70, %s71
    %p80 = scmp.eq.s32.totalorder %s18, 0
    %p81 = por %p79, %p80
    %p82 = scmp.ne.s32.totalorder %s70, %s71
    %p83 = scmp.eq.s32.totalorder %s19, 1
    %p84 = por %p82, %p83
    %p86 = scmp.ne.s32.totalorder %s71, %s85
    %p87 = scmp.eq.s32.totalorder %s19, 0
    %p88 = por %p86, %p87
    %s90 = sadd.s32 %s89, 1
    %p93 = scmp.eq.s32.totalorder %s13, 1
    %p94 = scmp.ne.s32.totalorder %s89, %s91
    %p95 = scmp.eq.s32.totalorder %s13, 0
    %p96 = por %p94, %p95
    %p97 = scmp.ne.s32.totalorder %s89, %s91
    %p98 = scmp.eq.s32.totalorder %s18, 1
    %p99 = por %p97, %p98
    %p100 = scmp.ne.s32.totalorder %s91, %s92
    %p101 = scmp.eq.s32.totalorder %s18, 0
    %p102 = por %p100, %p101
    %p103 = scmp.ne.s32.totalorder %s91, %s92
    %p104 = scmp.eq.s32.totalorder %s19, 1
    %p105 = por %p103, %p104
    %p107 = scmp.ne.s32.totalorder %s92, %s106
    %p108 = scmp.eq.s32.totalorder %s19, 0
    %p109 = por %p107, %p108
    %s111 = sadd.s32 %s110, 1
    %p114 = scmp.eq.s32.totalorder %s13, 1
    %p115 = scmp.ne.s32.totalorder %s110, %s112
    %p116 = scmp.eq.s32.totalorder %s13, 0
    %p117 = por %p115, %p116
    %p118 = scmp.ne.s32.totalorder %s110, %s112
    %p119 = scmp.eq.s32.totalorder %s18, 1
    %p120 = por %p118, %p119
    %p121 = scmp.ne.s32.totalorder %s112, %s113
    %p122 = scmp.eq.s32.totalorder %s18, 0
    %p123 = por %p121, %p122
    %p124 = scmp.ne.s32.totalorder %s112, %s113
    %p125 = scmp.eq.s32.totalorder %s19, 1
    %p126 = por %p124, %p125
    %p128 = scmp.ne.s32.totalorder %s113, %s127
    %p129 = scmp.eq.s32.totalorder %s19, 0
    %p130 = por %p128, %p129
    %s132 = sadd.s32 %s131, 1
    %p135 = scmp.eq.s32.totalorder %s13, 1
    %p136 = scmp.ne.s32.totalorder %s131, %s133
    %p137 = scmp.eq.s32.totalorder %s13, 0
    %p138 = por %p136, %p137
    %p139 = scmp.ne.s32.totalorder %s131, %s133
    %p140 = scmp.eq.s32.totalorder %s18, 1
    %p141 = por %p139, %p140
    %p142 = scmp.ne.s32.totalorder %s133, %s134
    %p143 = scmp.eq.s32.totalorder %s18, 0
    %p144 = por %p142, %p143
    %p145 = scmp.ne.s32.totalorder %s133, %s134
    %p146 = scmp.eq.s32.totalorder %s19, 1
    %p147 = por %p145, %p146
    %p149 = scmp.ne.s32.totalorder %s134, %s148
    %p150 = scmp.eq.s32.totalorder %s19, 0
    %p151 = por %p149, %p150
    %s153 = sadd.s32 %s152, 1
    %p156 = scmp.eq.s32.totalorder %s13, 1
    %p157 = scmp.ne.s32.totalorder %s152, %s154
    %p158 = scmp.eq.s32.totalorder %s13, 0
    %p159 = por %p157, %p158
    %p160 = scmp.ne.s32.totalorder %s152, %s154
    %p161 = scmp.eq.s32.totalorder %s18, 1
    %p162 = por %p160, %p161
    %p163 = scmp.ne.s32.totalorder %s154, %s155
    %p164 = scmp.eq.s32.totalorder %s18, 0
    %p165 = por %p163, %p164
    %p166 = scmp.ne.s32.totalorder %s154, %s155
    %p167 = scmp.eq.s32.totalorder %s19, 1
    %p168 = por %p166, %p167
    %p170 = scmp.ne.s32.totalorder %s155, %s169
    %p171 = scmp.eq.s32.totalorder %s19, 0
    %p172 = por %p170, %p171
    %s173 = ssub.s32 %s13, %s20
    %p174 = scmp.eq.s32.totalorder %s173, 0
    %s176 = sadd.s32 %s175, 1
    %s177 = scalar_select %p174, %s175, %s176
    %p180 = pneg %p174
    %p181 = scmp.eq.s32.totalorder %s13, 1
    %p182 = por %p180, %p181
    %p183 = scmp.ne.s32.totalorder %s175, %s178
    %p184 = scmp.eq.s32.totalorder %s13, 0
    %p185 = por %p183, %p184
    %p186 = scmp.ne.s32.totalorder %s175, %s178
    %p187 = scmp.eq.s32.totalorder %s18, 1
    %p188 = por %p186, %p187
    %p189 = scmp.ne.s32.totalorder %s178, %s179
    %p190 = scmp.eq.s32.totalorder %s18, 0
    %p191 = por %p189, %p190
    %p192 = scmp.ne.s32.totalorder %s178, %s179
    %p193 = scmp.eq.s32.totalorder %s19, 1
    %p194 = por %p192, %p193
    %p196 = scmp.ne.s32.totalorder %s179, %s195
    %p197 = scmp.eq.s32.totalorder %s19, 0
    %p198 = por %p196, %p197
    %p199 = scmp.le.s32.totalorder 1, %s13
    %p200 = scmp.lt.s32.totalorder %s13, 3
    %p201 = pnand %p199, %p200
    %p202 = pneg %p201
    // Predicated region
    $region9: #{tpu_custom_call.1} parent=5 // pred_check
      _
    $region10: #{tpu_custom_call.1} parent=5 // pred_check_branch
      %204 = sbr.rel (%p201) target = $region12
    $region11: #{tpu_custom_call.1} parent=5 // pred_region
      %s205 = ssub.s32 %s13, 1
      // Predicated region
      $region13: #{tpu_custom_call.1} parent=11 // pred_check
        %p206 = pneg %p60
      $region14: #{tpu_custom_call.1} parent=11 // pred_check_branch
        %208 = sbr.rel (%p206) target = $region16
      $region15: #{tpu_custom_call.1} parent=11 // pred_region
        _
      $region16: #{tpu_custom_call.1} parent=11 // pred_fallthru
        _
      // Predicated region
      $region17: #{tpu_custom_call.1} parent=11 // pred_check
        %p209 = pneg %p81
      $region18: #{tpu_custom_call.1} parent=11 // pred_check_branch
        %211 = sbr.rel (%p209) target = $region20
      $region19: #{tpu_custom_call.1} parent=11 // pred_region
        _
      $region20: #{tpu_custom_call.1} parent=11 // pred_fallthru
        _
      // Predicated region
      $region21: #{tpu_custom_call.1} parent=11 // pred_check
        %p212 = pneg %p102
      $region22: #{tpu_custom_call.1} parent=11 // pred_check_branch
        %214 = sbr.rel (%p212) target = $region24
      $region23: #{tpu_custom_call.1} parent=11 // pred_region
        _
      $region24: #{tpu_custom_call.1} parent=11 // pred_fallthru
        _
      // Predicated region
      $region25: #{tpu_custom_call.1} parent=11 // pred_check
        %p215 = pneg %p123
      $region26: #{tpu_custom_call.1} parent=11 // pred_check_branch
        %217 = sbr.rel (%p215) target = $region28
      $region27: #{tpu_custom_call.1} parent=11 // pred_region
        _
      $region28: #{tpu_custom_call.1} parent=11 // pred_fallthru
        _
      // Predicated region
      $region29: #{tpu_custom_call.1} parent=11 // pred_check
        %p218 = pneg %p144
      $region30: #{tpu_custom_call.1} parent=11 // pred_check_branch
        %220 = sbr.rel (%p218) target = $region32
      $region31: #{tpu_custom_call.1} parent=11 // pred_region
        _
      $region32: #{tpu_custom_call.1} parent=11 // pred_fallthru
        _
      // Predicated region
      $region33: #{tpu_custom_call.1} parent=11 // pred_check
        %p221 = pneg %p165
      $region34: #{tpu_custom_call.1} parent=11 // pred_check_branch
        %223 = sbr.rel (%p221) target = $region36
      $region35: #{tpu_custom_call.1} parent=11 // pred_region
        _
      $region36: #{tpu_custom_call.1} parent=11 // pred_fallthru
        _
    $region12: #{tpu_custom_call.1} parent=5 // pred_fallthru
      _
    %p224 = scmp.lt.s32.totalorder %s13, 2
    // Predicated region
    $region37: #{tpu_custom_call.1} parent=5 // pred_check
      %p225 = pneg %p224
    $region38: #{tpu_custom_call.1} parent=5 // pred_check_branch
      %227 = sbr.rel (%p225) target = $region40
    $region39: #{tpu_custom_call.1} parent=5 // pred_region
      // Predicated region
      $region41: #{tpu_custom_call.1} parent=39 // pred_check
        %p228 = pneg %p33
      $region42: #{tpu_custom_call.1} parent=39 // pred_check_branch
        %230 = sbr.rel (%p228) target = $region44
      $region43: #{tpu_custom_call.1} parent=39 // pred_region
        %s231 = smul.u32 16, %s13
        %p232 = scmp.lt.s32.totalorder %s231, 31
        %s233 = scalar_select %p232, %s231, 31
        %s234 = smul.addr %s233, 8
        %s235 = scalar_lea.vmem %s0, %s234
        %s236 = smul.u32 16, %s13
      $region44: #{tpu_custom_call.1} parent=39 // pred_fallthru
        _
    $region40: #{tpu_custom_call.1} parent=5 // pred_fallthru
      _
    %p237 = scmp.le.s32.totalorder 1, %s13
    %p238 = scmp.lt.s32.totalorder %s13, 3
    %p239 = pnand %p237, %p238
    %p240 = pneg %p239
    // Predicated region
    $region45: #{tpu_custom_call.1} parent=5 // pred_check
      _
    $region46: #{tpu_custom_call.1} parent=5 // pred_check_branch
      %242 = sbr.rel (%p239) target = $region48
    $region47: #{tpu_custom_call.1} parent=5 // pred_region
      %s243 = ssub.s32 %s13, 1
      %s244 = smul.u32 16, %s18
      %p245 = scmp.lt.s32.totalorder %s244, 31
      %s246 = scalar_select %p245, %s244, 31
      %s247 = smul.addr %s246, 8
      %s248 = scalar_lea.vmem %s0, %s247
      %p249 = pneg %p39
      %p250 = pneg %p36
      %p251 = pneg %p60
      %p252 = pneg %p57
      %p253 = pneg %p81
      %p254 = pneg %p78
      %p255 = pneg %p102
      %p256 = pneg %p99
      %p257 = pneg %p123
      %p258 = pneg %p120
      %p259 = pneg %p144
      %p260 = pneg %p141
      %p261 = pneg %p165
      %p262 = pneg %p162
      %p263 = pneg %p191
      %p264 = pneg %p188
      %s265 = smul.u32 16, %s18
      %p266 = scmp.lt.s32.totalorder %s265, 31
      %s267 = scalar_select %p266, %s265, 31
      %s268 = smul.addr %s267, 8
      %s269 = scalar_lea.vmem %s7, %s268
      %s270 = smul.u32 16, %s18
      %p271 = scmp.lt.s32.totalorder %s270, 31
      %s272 = scalar_select %p271, %s270, 31
      %s273 = smul.addr %s272, 8
      %s274 = scalar_lea.vmem %s0, %s273
      %s275 = smul.u32 16, %s18
      %s276 = smul.u32 16, %s18
      %p277 = scmp.lt.s32.totalorder %s276, 31
      %s278 = scalar_select %p277, %s276, 31
      %s279 = smul.addr %s278, 8
      %s280 = scalar_lea.vmem %s7, %s279
      %s281 = smul.u32 16, %s18
      %v283 = vld [vmem:[%s274] sm:$0xff]
      %v284 = vld [vmem:[%s274 + $0x8] sm:$0xff]
      %v285 = vld [vmem:[%s274 + $0x10] sm:$0xff]
      %v286 = vld [vmem:[%s274 + $0x18] sm:$0xff]
      %v287 = vld [vmem:[%s274 + $0x20] sm:$0xff]
      %v288 = vld [vmem:[%s274 + $0x28] sm:$0xff]
      %v289 = vld [vmem:[%s274 + $0x30] sm:$0xff]
      %v290 = vld [vmem:[%s274 + $0x38] sm:$0xff]
      %v291 = vld [vmem:[%s274 + $0x40] sm:$0xff]
      %v292 = vld [vmem:[%s274 + $0x48] sm:$0xff]
      %v293 = vld [vmem:[%s274 + $0x50] sm:$0xff]
      %v294 = vld [vmem:[%s274 + $0x58] sm:$0xff]
      %v295 = vld [vmem:[%s274 + $0x60] sm:$0xff]
      %v296 = vld [vmem:[%s274 + $0x68] sm:$0xff]
      %v297 = vld [vmem:[%s274 + $0x70] sm:$0xff]
      %v298 = vld [vmem:[%s274 + $0x78] sm:$0xff]
      %v299 = vld [vmem:[%s1] sm:$0xf]
      %v300 = vld [vmem:[%s2] sm:$0x1]
      %302 = vset.pattern.permute.xlu0 0
      %303 = vperm.xlu0 %302, %v283
      %v304 = vpop.permute.xlu0 %303
      %307 = vset.pattern.permute.xlu0 0
      %308 = vperm.xlu0 %307, %v284
      %v309 = vpop.permute.xlu0 %308
      %312 = vset.pattern.permute.xlu0 0
      %313 = vperm.xlu0 %312, %v285
      %v314 = vpop.permute.xlu0 %313
      %317 = vset.pattern.permute.xlu0 0
      %318 = vperm.xlu0 %317, %v286
      %v319 = vpop.permute.xlu0 %318
      %322 = vset.pattern.permute.xlu0 0
      %323 = vperm.xlu0 %322, %v287
      %v324 = vpop.permute.xlu0 %323
      %327 = vset.pattern.permute.xlu0 0
      %328 = vperm.xlu0 %327, %v288
      %v329 = vpop.permute.xlu0 %328
      %332 = vset.pattern.permute.xlu0 0
      %333 = vperm.xlu0 %332, %v289
      %v334 = vpop.permute.xlu0 %333
      %337 = vset.pattern.permute.xlu0 0
      %338 = vperm.xlu0 %337, %v290
      %v339 = vpop.permute.xlu0 %338
      %342 = vset.pattern.permute.xlu0 0
      %343 = vperm.xlu0 %342, %v291
      %v344 = vpop.permute.xlu0 %343
      %347 = vset.pattern.permute.xlu0 0
      %348 = vperm.xlu0 %347, %v292
      %v349 = vpop.permute.xlu0 %348
      %352 = vset.pattern.permute.xlu0 0
      %353 = vperm.xlu0 %352, %v293
      %v354 = vpop.permute.xlu0 %353
      %357 = vset.pattern.permute.xlu0 0
      %358 = vperm.xlu0 %357, %v294
      %v359 = vpop.permute.xlu0 %358
      %362 = vset.pattern.permute.xlu0 0
      %363 = vperm.xlu0 %362, %v295
      %v364 = vpop.permute.xlu0 %363
      %367 = vset.pattern.permute.xlu0 0
      %368 = vperm.xlu0 %367, %v296
      %v369 = vpop.permute.xlu0 %368
      %372 = vset.pattern.permute.xlu0 0
      %373 = vperm.xlu0 %372, %v297
      %v374 = vpop.permute.xlu0 %373
      %377 = vset.pattern.permute.xlu0 0
      %378 = vperm.xlu0 %377, %v298
      %v379 = vpop.permute.xlu0 %378
      %v381 = vlaneseq
      %v382 = vshrl.u32 %v381, 7
      %v383 = vsub.s32 0, %v382
      %v384 = vrot.slane %v299, %v383
      %v385 = vmul.f32 %v304, %v384
      %v386 = vmul.f32 %v309, %v384
      %v387 = vmul.f32 %v314, %v384
      %v388 = vmul.f32 %v319, %v384
      %v389 = vmul.f32 %v324, %v384
      %v390 = vmul.f32 %v329, %v384
      %v391 = vmul.f32 %v334, %v384
      %v392 = vmul.f32 %v339, %v384
      %v393 = vmul.f32 %v344, %v384
      %v394 = vmul.f32 %v349, %v384
      %v395 = vmul.f32 %v354, %v384
      %v396 = vmul.f32 %v359, %v384
      %v397 = vmul.f32 %v364, %v384
      %v398 = vmul.f32 %v369, %v384
      %v399 = vmul.f32 %v374, %v384
      %v400 = vmul.f32 %v379, %v384
      %v402 = vlaneseq
      %v403 = vshrl.u32 %v402, 7
      %v404 = vsub.s32 0, %v403
      %v405 = vrot.slane %v300, %v404
      %v407 = vadd.f32 %v405, %v385
      %v408 = vadd.f32 %v405, %v386
      %v409 = vadd.f32 %v405, %v387
      %v410 = vadd.f32 %v405, %v388
      %v411 = vadd.f32 %v405, %v389
      %v412 = vadd.f32 %v405, %v390
      %v413 = vadd.f32 %v405, %v391
      %v414 = vadd.f32 %v405, %v392
      %v415 = vadd.f32 %v405, %v393
      %v416 = vadd.f32 %v405, %v394
      %v417 = vadd.f32 %v405, %v395
      %v418 = vadd.f32 %v405, %v396
      %v419 = vadd.f32 %v405, %v397
      %v420 = vadd.f32 %v405, %v398
      %v421 = vadd.f32 %v405, %v399
      %v422 = vadd.f32 %v405, %v400
      %423 = vset.pattern.permute.xlu0 1
      %424 = vperm.xlu0 %423, %v283
      %v425 = vpop.permute.xlu0 %424
      %427 = vset.pattern.permute.xlu0 1
      %428 = vperm.xlu0 %427, %v284
      %v429 = vpop.permute.xlu0 %428
      %431 = vset.pattern.permute.xlu0 1
      %432 = vperm.xlu0 %431, %v285
      %v433 = vpop.permute.xlu0 %432
      %435 = vset.pattern.permute.xlu0 1
      %436 = vperm.xlu0 %435, %v286
      %v437 = vpop.permute.xlu0 %436
      %439 = vset.pattern.permute.xlu0 1
      %440 = vperm.xlu0 %439, %v287
      %v441 = vpop.permute.xlu0 %440
      %443 = vset.pattern.permute.xlu0 1
      %444 = vperm.xlu0 %443, %v288
      %v445 = vpop.permute.xlu0 %444
      %447 = vset.pattern.permute.xlu0 1
      %448 = vperm.xlu0 %447, %v289
      %v449 = vpop.permute.xlu0 %448
      %451 = vset.pattern.permute.xlu0 1
      %452 = vperm.xlu0 %451, %v290
      %v453 = vpop.permute.xlu0 %452
      %455 = vset.pattern.permute.xlu0 1
      %456 = vperm.xlu0 %455, %v291
      %v457 = vpop.permute.xlu0 %456
      %459 = vset.pattern.permute.xlu0 1
      %460 = vperm.xlu0 %459, %v292
      %v461 = vpop.permute.xlu0 %460
      %463 = vset.pattern.permute.xlu0 1
      %464 = vperm.xlu0 %463, %v293
      %v465 = vpop.permute.xlu0 %464
      %467 = vset.pattern.permute.xlu0 1
      %468 = vperm.xlu0 %467, %v294
      %v469 = vpop.permute.xlu0 %468
      %471 = vset.pattern.permute.xlu0 1
      %472 = vperm.xlu0 %471, %v295
      %v473 = vpop.permute.xlu0 %472
      %475 = vset.pattern.permute.xlu0 1
      %476 = vperm.xlu0 %475, %v296
      %v477 = vpop.permute.xlu0 %476
      %479 = vset.pattern.permute.xlu0 1
      %480 = vperm.xlu0 %479, %v297
      %v481 = vpop.permute.xlu0 %480
      %483 = vset.pattern.permute.xlu0 1
      %484 = vperm.xlu0 %483, %v298
      %v485 = vpop.permute.xlu0 %484
      %v487 = vlaneseq
      %v488 = vshrl.u32 %v487, 7
      %v489 = vsub.s32 1, %v488
      %v490 = vrot.slane %v299, %v489
      %v491 = vmul.f32 %v425, %v490
      %v492 = vmul.f32 %v429, %v490
      %v493 = vmul.f32 %v433, %v490
      %v494 = vmul.f32 %v437, %v490
      %v495 = vmul.f32 %v441, %v490
      %v496 = vmul.f32 %v445, %v490
      %v497 = vmul.f32 %v449, %v490
      %v498 = vmul.f32 %v453, %v490
      %v499 = vmul.f32 %v457, %v490
      %v500 = vmul.f32 %v461, %v490
      %v501 = vmul.f32 %v465, %v490
      %v502 = vmul.f32 %v469, %v490
      %v503 = vmul.f32 %v473, %v490
      %v504 = vmul.f32 %v477, %v490
      %v505 = vmul.f32 %v481, %v490
      %v506 = vmul.f32 %v485, %v490
      %v507 = vadd.f32 %v407, %v491
      %v508 = vadd.f32 %v408, %v492
      %v509 = vadd.f32 %v409, %v493
      %v510 = vadd.f32 %v410, %v494
      %v511 = vadd.f32 %v411, %v495
      %v512 = vadd.f32 %v412, %v496
      %v513 = vadd.f32 %v413, %v497
      %v514 = vadd.f32 %v414, %v498
      %v515 = vadd.f32 %v415, %v499
      %v516 = vadd.f32 %v416, %v500
      %v517 = vadd.f32 %v417, %v501
      %v518 = vadd.f32 %v418, %v502
      %v519 = vadd.f32 %v419, %v503
      %v520 = vadd.f32 %v420, %v504
      %v521 = vadd.f32 %v421, %v505
      %v522 = vadd.f32 %v422, %v506
      %523 = vset.pattern.permute.xlu0 2
      %524 = vperm.xlu0 %523, %v283
      %v525 = vpop.permute.xlu0 %524
      %527 = vset.pattern.permute.xlu0 2
      %528 = vperm.xlu0 %527, %v284
      %v529 = vpop.permute.xlu0 %528
      %531 = vset.pattern.permute.xlu0 2
      %532 = vperm.xlu0 %531, %v285
      %v533 = vpop.permute.xlu0 %532
      %535 = vset.pattern.permute.xlu0 2
      %536 = vperm.xlu0 %535, %v286
      %v537 = vpop.permute.xlu0 %536
      %539 = vset.pattern.permute.xlu0 2
      %540 = vperm.xlu0 %539, %v287
      %v541 = vpop.permute.xlu0 %540
      %543 = vset.pattern.permute.xlu0 2
      %544 = vperm.xlu0 %543, %v288
      %v545 = vpop.permute.xlu0 %544
      %547 = vset.pattern.permute.xlu0 2
      %548 = vperm.xlu0 %547, %v289
      %v549 = vpop.permute.xlu0 %548
      %551 = vset.pattern.permute.xlu0 2
      %552 = vperm.xlu0 %551, %v290
      %v553 = vpop.permute.xlu0 %552
      %555 = vset.pattern.permute.xlu0 2
      %556 = vperm.xlu0 %555, %v291
      %v557 = vpop.permute.xlu0 %556
      %559 = vset.pattern.permute.xlu0 2
      %560 = vperm.xlu0 %559, %v292
      %v561 = vpop.permute.xlu0 %560
      %563 = vset.pattern.permute.xlu0 2
      %564 = vperm.xlu0 %563, %v293
      %v565 = vpop.permute.xlu0 %564
      %567 = vset.pattern.permute.xlu0 2
      %568 = vperm.xlu0 %567, %v294
      %v569 = vpop.permute.xlu0 %568
      %571 = vset.pattern.permute.xlu0 2
      %572 = vperm.xlu0 %571, %v295
      %v573 = vpop.permute.xlu0 %572
      %575 = vset.pattern.permute.xlu0 2
      %576 = vperm.xlu0 %575, %v296
      %v577 = vpop.permute.xlu0 %576
      %579 = vset.pattern.permute.xlu0 2
      %580 = vperm.xlu0 %579, %v297
      %v581 = vpop.permute.xlu0 %580
      %583 = vset.pattern.permute.xlu0 2
      %584 = vperm.xlu0 %583, %v298
      %v585 = vpop.permute.xlu0 %584
      %v587 = vlaneseq
      %v588 = vshrl.u32 %v587, 7
      %v589 = vsub.s32 2, %v588
      %v590 = vrot.slane %v299, %v589
      %v591 = vmul.f32 %v525, %v590
      %v592 = vmul.f32 %v529, %v590
      %v593 = vmul.f32 %v533, %v590
      %v594 = vmul.f32 %v537, %v590
      %v595 = vmul.f32 %v541, %v590
      %v596 = vmul.f32 %v545, %v590
      %v597 = vmul.f32 %v549, %v590
      %v598 = vmul.f32 %v553, %v590
      %v599 = vmul.f32 %v557, %v590
      %v600 = vmul.f32 %v561, %v590
      %v601 = vmul.f32 %v565, %v590
      %v602 = vmul.f32 %v569, %v590
      %v603 = vmul.f32 %v573, %v590
      %v604 = vmul.f32 %v577, %v590
      %v605 = vmul.f32 %v581, %v590
      %v606 = vmul.f32 %v585, %v590
      %v607 = vadd.f32 %v507, %v591
      %v608 = vadd.f32 %v508, %v592
      %v609 = vadd.f32 %v509, %v593
      %v610 = vadd.f32 %v510, %v594
      %v611 = vadd.f32 %v511, %v595
      %v612 = vadd.f32 %v512, %v596
      %v613 = vadd.f32 %v513, %v597
      %v614 = vadd.f32 %v514, %v598
      %v615 = vadd.f32 %v515, %v599
      %v616 = vadd.f32 %v516, %v600
      %v617 = vadd.f32 %v517, %v601
      %v618 = vadd.f32 %v518, %v602
      %v619 = vadd.f32 %v519, %v603
      %v620 = vadd.f32 %v520, %v604
      %v621 = vadd.f32 %v521, %v605
      %v622 = vadd.f32 %v522, %v606
      %623 = vset.pattern.permute.xlu0 3
      %624 = vperm.xlu0 %623, %v283
      %v625 = vpop.permute.xlu0 %624
      %627 = vset.pattern.permute.xlu0 3
      %628 = vperm.xlu0 %627, %v284
      %v629 = vpop.permute.xlu0 %628
      %631 = vset.pattern.permute.xlu0 3
      %632 = vperm.xlu0 %631, %v285
      %v633 = vpop.permute.xlu0 %632
      %635 = vset.pattern.permute.xlu0 3
      %636 = vperm.xlu0 %635, %v286
      %v637 = vpop.permute.xlu0 %636
      %639 = vset.pattern.permute.xlu0 3
      %640 = vperm.xlu0 %639, %v287
      %v641 = vpop.permute.xlu0 %640
      %643 = vset.pattern.permute.xlu0 3
      %644 = vperm.xlu0 %643, %v288
      %v645 = vpop.permute.xlu0 %644
      %647 = vset.pattern.permute.xlu0 3
      %648 = vperm.xlu0 %647, %v289
      %v649 = vpop.permute.xlu0 %648
      %651 = vset.pattern.permute.xlu0 3
      %652 = vperm.xlu0 %651, %v290
      %v653 = vpop.permute.xlu0 %652
      %655 = vset.pattern.permute.xlu0 3
      %656 = vperm.xlu0 %655, %v291
      %v657 = vpop.permute.xlu0 %656
      %659 = vset.pattern.permute.xlu0 3
      %660 = vperm.xlu0 %659, %v292
      %v661 = vpop.permute.xlu0 %660
      %663 = vset.pattern.permute.xlu0 3
      %664 = vperm.xlu0 %663, %v293
      %v665 = vpop.permute.xlu0 %664
      %667 = vset.pattern.permute.xlu0 3
      %668 = vperm.xlu0 %667, %v294
      %v669 = vpop.permute.xlu0 %668
      %671 = vset.pattern.permute.xlu0 3
      %672 = vperm.xlu0 %671, %v295
      %v673 = vpop.permute.xlu0 %672
      %675 = vset.pattern.permute.xlu0 3
      %676 = vperm.xlu0 %675, %v296
      %v677 = vpop.permute.xlu0 %676
      %679 = vset.pattern.permute.xlu0 3
      %680 = vperm.xlu0 %679, %v297
      %v681 = vpop.permute.xlu0 %680
      %683 = vset.pattern.permute.xlu0 3
      %684 = vperm.xlu0 %683, %v298
      %v685 = vpop.permute.xlu0 %684
      %v687 = vlaneseq
      %v688 = vshrl.u32 %v687, 7
      %v689 = vsub.s32 3, %v688
      %v690 = vrot.slane %v299, %v689
      %v691 = vmul.f32 %v625, %v690
      %v692 = vmul.f32 %v629, %v690
      %v693 = vmul.f32 %v633, %v690
      %v694 = vmul.f32 %v637, %v690
      %v695 = vmul.f32 %v641, %v690
      %v696 = vmul.f32 %v645, %v690
      %v697 = vmul.f32 %v649, %v690
      %v698 = vmul.f32 %v653, %v690
      %v699 = vmul.f32 %v657, %v690
      %v700 = vmul.f32 %v661, %v690
      %v701 = vmul.f32 %v665, %v690
      %v702 = vmul.f32 %v669, %v690
      %v703 = vmul.f32 %v673, %v690
      %v704 = vmul.f32 %v677, %v690
      %v705 = vmul.f32 %v681, %v690
      %v706 = vmul.f32 %v685, %v690
      %v707 = vadd.f32 %v607, %v691
      %v708 = vadd.f32 %v608, %v692
      %v709 = vadd.f32 %v609, %v693
      %v710 = vadd.f32 %v610, %v694
      %v711 = vadd.f32 %v611, %v695
      %v712 = vadd.f32 %v612, %v696
      %v713 = vadd.f32 %v613, %v697
      %v714 = vadd.f32 %v614, %v698
      %v715 = vadd.f32 %v615, %v699
      %v716 = vadd.f32 %v616, %v700
      %v717 = vadd.f32 %v617, %v701
      %v718 = vadd.f32 %v618, %v702
      %v719 = vadd.f32 %v619, %v703
      %v720 = vadd.f32 %v620, %v704
      %v721 = vadd.f32 %v621, %v705
      %v722 = vadd.f32 %v622, %v706
      %v723 = vmax.f32 %v707, 0.0
      %v724 = vmax.f32 %v708, 0.0
      %v725 = vmax.f32 %v709, 0.0
      %v726 = vmax.f32 %v710, 0.0
      %v727 = vmax.f32 %v711, 0.0
      %v728 = vmax.f32 %v712, 0.0
      %v729 = vmax.f32 %v713, 0.0
      %v730 = vmax.f32 %v714, 0.0
      %v731 = vmax.f32 %v715, 0.0
      %v732 = vmax.f32 %v716, 0.0
      %v733 = vmax.f32 %v717, 0.0
      %v734 = vmax.f32 %v718, 0.0
      %v735 = vmax.f32 %v719, 0.0
      %v736 = vmax.f32 %v720, 0.0
      %v737 = vmax.f32 %v721, 0.0
      %v738 = vmax.f32 %v722, 0.0
      %v739 = vpack.c.bf16 %v724, %v723
      %v740 = vpack.c.bf16 %v726, %v725
      %v741 = vpack.c.bf16 %v728, %v727
      %v742 = vpack.c.bf16 %v730, %v729
      %v743 = vpack.c.bf16 %v732, %v731
      %v744 = vpack.c.bf16 %v734, %v733
      %v745 = vpack.c.bf16 %v736, %v735
      %v746 = vpack.c.bf16 %v738, %v737
      %v747 = vld [vmem:[%s3] sm:$0xf]
      %v748 = vld [vmem:[%s3 + $0x4] sm:$0xf]
      %v749 = vld [vmem:[%s3 + $0x8] sm:$0xf]
      %v750 = vld [vmem:[%s3 + $0xc] sm:$0xf]
      %v751 = vld [vmem:[%s3 + $0x10] sm:$0xf]
      %v752 = vld [vmem:[%s3 + $0x14] sm:$0xf]
      %v753 = vld [vmem:[%s3 + $0x18] sm:$0xf]
      %v754 = vld [vmem:[%s3 + $0x1c] sm:$0xf]
      %v755 = vld [vmem:[%s3 + $0x20] sm:$0xf]
      %v756 = vld [vmem:[%s3 + $0x24] sm:$0xf]
      %v757 = vld [vmem:[%s3 + $0x28] sm:$0xf]
      %v758 = vld [vmem:[%s3 + $0x2c] sm:$0xf]
      %v759 = vld [vmem:[%s3 + $0x30] sm:$0xf]
      %v760 = vld [vmem:[%s3 + $0x34] sm:$0xf]
      %v761 = vld [vmem:[%s3 + $0x38] sm:$0xf]
      %v762 = vld [vmem:[%s3 + $0x3c] sm:$0xf]
      %v763 = vld [vmem:[%s4] sm:$0x1]
      %v765 = vlaneseq
      %v766 = vshrl.u32 %v765, 7
      %v767 = vsub.s32 0, %v766
      %v768 = vrot.slane %v763, %v767
      %v786 = vunpack.c.l.b16 %v747
      %v787 = vunpack.c.l.b16 %v748
      %v788 = vunpack.c.l.b16 %v749
      %v789 = vunpack.c.l.b16 %v750
      %v790 = vunpack.c.l.b16 %v751
      %v791 = vunpack.c.l.b16 %v752
      %v792 = vunpack.c.l.b16 %v753
      %v793 = vunpack.c.l.b16 %v754
      %v794 = vunpack.c.l.b16 %v755
      %v795 = vunpack.c.l.b16 %v756
      %v796 = vunpack.c.l.b16 %v757
      %v797 = vunpack.c.l.b16 %v758
      %v798 = vunpack.c.l.b16 %v759
      %v799 = vunpack.c.l.b16 %v760
      %v800 = vunpack.c.l.b16 %v761
      %v801 = vunpack.c.l.b16 %v762
      %v802 = vpack.c.b16 %v787, %v786
      %v803 = vpack.c.b16 %v789, %v788
      %v804 = vpack.c.b16 %v791, %v790
      %v805 = vpack.c.b16 %v793, %v792
      %v806 = vpack.c.b16 %v795, %v794
      %v807 = vpack.c.b16 %v797, %v796
      %v808 = vpack.c.b16 %v799, %v798
      %v809 = vpack.c.b16 %v801, %v800
      %818 = vmatprep.subr.bf16.mxu0 0
      %819 = vmatpush1.bf16.msra.mxu0 %v802
      %820 = vmatprep.subr.bf16.mxu0 0
      %821 = vmatpush1.bf16.msra.mxu0 %v803
      %822 = vmatprep.subr.bf16.mxu0 0
      %823 = vmatpush1.bf16.msra.mxu0 %v804
      %824 = vmatprep.subr.bf16.mxu0 0
      %825 = vmatpush1.bf16.msra.mxu0 %v805
      %826 = vmatprep.subr.bf16.mxu0 0
      %827 = vmatpush1.bf16.msra.mxu0 %v806
      %828 = vmatprep.subr.bf16.mxu0 0
      %829 = vmatpush1.bf16.msra.mxu0 %v807
      %830 = vmatprep.subr.bf16.mxu0 0
      %831 = vmatpush1.bf16.msra.mxu0 %v808
      %832 = vmatprep.subr.bf16.mxu0 0
      %833 = vmatpush1.bf16.msra.mxu0 %v809
      %834 = vmatprep.subr.bf16.mxu0 0
      %835 = vmatpush1.bf16.msra.mxu0 0
      %836 = vmatprep.subr.bf16.mxu0 0
      %837 = vmatpush1.bf16.msra.mxu0 0
      %838 = vmatprep.subr.bf16.mxu0 0
      %839 = vmatpush1.bf16.msra.mxu0 0
      %840 = vmatprep.subr.bf16.mxu0 0
      %841 = vmatpush1.bf16.msra.mxu0 0
      %842 = vmatprep.subr.bf16.mxu0 0
      %843 = vmatpush1.bf16.msra.mxu0 0
      %844 = vmatprep.subr.bf16.mxu0 0
      %845 = vmatpush1.bf16.msra.mxu0 0
      %846 = vmatprep.subr.bf16.mxu0 0
      %847 = vmatpush1.bf16.msra.mxu0 0
      %848 = vmatprep.subr.bf16.mxu0 0
      %849 = vmatpush1.bf16.msra.mxu0 0
      %850 = vmatprep.mubr.bf16.mxu0 0
      %851 = vmatmul.mubr.bf16.gmra.mrb[0].mxu0 %v739
      %v852 = vpop.f32.mrb[0].mxu0
      %v853 = vadd.f32 %v768, %v852
      %v854 = vpop.f32.mrb[0].mxu0
      %v855 = vpop.f32.mrb[0].mxu0
      %v856 = vadd.f32 %v768, %v855
      %v857 = vpop.f32.mrb[0].mxu0
      %858 = vmatprep.mubr.bf16.mxu0 0
      %859 = vmatmul.mubr.bf16.gmra.mrb[0].mxu0 %v740
      %v860 = vpop.f32.mrb[0].mxu0
      %v861 = vadd.f32 %v768, %v860
      %v862 = vpop.f32.mrb[0].mxu0
      %v863 = vpop.f32.mrb[0].mxu0
      %v864 = vadd.f32 %v768, %v863
      %v865 = vpop.f32.mrb[0].mxu0
      %866 = vmatprep.mubr.bf16.mxu0 0
      %867 = vmatmul.mubr.bf16.gmra.mrb[0].mxu0 %v741
      %v868 = vpop.f32.mrb[0].mxu0
      %v869 = vadd.f32 %v768, %v868
      %v870 = vpop.f32.mrb[0].mxu0
      %v871 = vpop.f32.mrb[0].mxu0
      %v872 = vadd.f32 %v768, %v871
      %v873 = vpop.f32.mrb[0].mxu0
      %874 = vmatprep.mubr.bf16.mxu0 0
      %875 = vmatmul.mubr.bf16.gmra.mrb[0].mxu0 %v742
      %v876 = vpop.f32.mrb[0].mxu0
      %v877 = vadd.f32 %v768, %v876
      %v878 = vpop.f32.mrb[0].mxu0
      %v879 = vpop.f32.mrb[0].mxu0
      %v880 = vadd.f32 %v768, %v879
      %v881 = vpop.f32.mrb[0].mxu0
      %882 = vmatprep.mubr.bf16.mxu0 0
      %883 = vmatmul.mubr.bf16.gmra.mrb[0].mxu0 %v743
      %v884 = vpop.f32.mrb[0].mxu0
      %v885 = vadd.f32 %v768, %v884
      %v886 = vpop.f32.mrb[0].mxu0
      %v887 = vpop.f32.mrb[0].mxu0
      %v888 = vadd.f32 %v768, %v887
      %v889 = vpop.f32.mrb[0].mxu0
      %890 = vmatprep.mubr.bf16.mxu0 0
      %891 = vmatmul.mubr.bf16.gmra.mrb[0].mxu0 %v744
      %v892 = vpop.f32.mrb[0].mxu0
      %v893 = vadd.f32 %v768, %v892
      %v894 = vpop.f32.mrb[0].mxu0
      %v895 = vpop.f32.mrb[0].mxu0
      %v896 = vadd.f32 %v768, %v895
      %v897 = vpop.f32.mrb[0].mxu0
      %898 = vmatprep.mubr.bf16.mxu0 0
      %899 = vmatmul.mubr.bf16.gmra.mrb[0].mxu0 %v745
      %v900 = vpop.f32.mrb[0].mxu0
      %v901 = vadd.f32 %v768, %v900
      %v902 = vpop.f32.mrb[0].mxu0
      %v903 = vpop.f32.mrb[0].mxu0
      %v904 = vadd.f32 %v768, %v903
      %v905 = vpop.f32.mrb[0].mxu0
      %906 = vmatprep.mubr.bf16.mxu0 0
      %907 = vmatmul.mubr.bf16.gmra.mrb[0].mxu0 %v746
      %v908 = vpop.f32.mrb[0].mxu0
      %v909 = vadd.f32 %v768, %v908
      %v910 = vpop.f32.mrb[0].mxu0
      %v911 = vpop.f32.mrb[0].mxu0
      %v912 = vadd.f32 %v768, %v911
      %v913 = vpop.f32.mrb[0].mxu0
      %914 = vdwg.mxu0
      %v915 = vmax.f32 %v853, 0.0
      %v916 = vmax.f32 %v856, 0.0
      %v917 = vmax.f32 %v861, 0.0
      %v918 = vmax.f32 %v864, 0.0
      %v919 = vmax.f32 %v869, 0.0
      %v920 = vmax.f32 %v872, 0.0
      %v921 = vmax.f32 %v877, 0.0
      %v922 = vmax.f32 %v880, 0.0
      %v923 = vmax.f32 %v885, 0.0
      %v924 = vmax.f32 %v888, 0.0
      %v925 = vmax.f32 %v893, 0.0
      %v926 = vmax.f32 %v896, 0.0
      %v927 = vmax.f32 %v901, 0.0
      %v928 = vmax.f32 %v904, 0.0
      %v929 = vmax.f32 %v909, 0.0
      %v930 = vmax.f32 %v912, 0.0
      %v931 = vpack.c.bf16 %v916, %v915
      %v932 = vpack.c.bf16 %v918, %v917
      %v933 = vpack.c.bf16 %v920, %v919
      %v934 = vpack.c.bf16 %v922, %v921
      %v935 = vpack.c.bf16 %v924, %v923
      %v936 = vpack.c.bf16 %v926, %v925
      %v937 = vpack.c.bf16 %v928, %v927
      %v938 = vpack.c.bf16 %v930, %v929
      %v939 = vld [vmem:[%s5] sm:$0xf]
      %v940 = vld [vmem:[%s5 + $0x4] sm:$0xf]
      %v941 = vld [vmem:[%s5 + $0x8] sm:$0xf]
      %v942 = vld [vmem:[%s5 + $0xc] sm:$0xf]
      %v943 = vld [vmem:[%s5 + $0x10] sm:$0xf]
      %v944 = vld [vmem:[%s5 + $0x14] sm:$0xf]
      %v945 = vld [vmem:[%s5 + $0x18] sm:$0xf]
      %v946 = vld [vmem:[%s5 + $0x1c] sm:$0xf]
      %v947 = vld [vmem:[%s5 + $0x20] sm:$0xf]
      %v948 = vld [vmem:[%s5 + $0x24] sm:$0xf]
      %v949 = vld [vmem:[%s5 + $0x28] sm:$0xf]
      %v950 = vld [vmem:[%s5 + $0x2c] sm:$0xf]
      %v951 = vld [vmem:[%s5 + $0x30] sm:$0xf]
      %v952 = vld [vmem:[%s5 + $0x34] sm:$0xf]
      %v953 = vld [vmem:[%s5 + $0x38] sm:$0xf]
      %v954 = vld [vmem:[%s5 + $0x3c] sm:$0xf]
      %v955 = vld [vmem:[%s6] sm:$0x1]
      %v957 = vlaneseq
      %v958 = vshrl.u32 %v957, 7
      %v959 = vsub.s32 0, %v958
      %v960 = vrot.slane %v955, %v959
      %v978 = vunpack.c.l.b16 %v939
      %v979 = vunpack.c.l.b16 %v940
      %v980 = vunpack.c.l.b16 %v941
      %v981 = vunpack.c.l.b16 %v942
      %v982 = vunpack.c.l.b16 %v943
      %v983 = vunpack.c.l.b16 %v944
      %v984 = vunpack.c.l.b16 %v945
      %v985 = vunpack.c.l.b16 %v946
      %v986 = vunpack.c.l.b16 %v947
      %v987 = vunpack.c.l.b16 %v948
      %v988 = vunpack.c.l.b16 %v949
      %v989 = vunpack.c.l.b16 %v950
      %v990 = vunpack.c.l.b16 %v951
      %v991 = vunpack.c.l.b16 %v952
      %v992 = vunpack.c.l.b16 %v953
      %v993 = vunpack.c.l.b16 %v954
      %v994 = vpack.c.b16 %v979, %v978
      %v995 = vpack.c.b16 %v981, %v980
      %v996 = vpack.c.b16 %v983, %v982
      %v997 = vpack.c.b16 %v985, %v984
      %v998 = vpack.c.b16 %v987, %v986
      %v999 = vpack.c.b16 %v989, %v988
      %v1000 = vpack.c.b16 %v991, %v990
      %v1001 = vpack.c.b16 %v993, %v992
      %1010 = vmatprep.subr.bf16.mxu0 0
      %1011 = vmatpush1.bf16.msra.mxu0 %v994
      %1012 = vmatprep.subr.bf16.mxu0 0
      %1013 = vmatpush1.bf16.msra.mxu0 %v995
      %1014 = vmatprep.subr.bf16.mxu0 0
      %1015 = vmatpush1.bf16.msra.mxu0 %v996
      %1016 = vmatprep.subr.bf16.mxu0 0
      %1017 = vmatpush1.bf16.msra.mxu0 %v997
      %1018 = vmatprep.subr.bf16.mxu0 0
      %1019 = vmatpush1.bf16.msra.mxu0 %v998
      %1020 = vmatprep.subr.bf16.mxu0 0
      %1021 = vmatpush1.bf16.msra.mxu0 %v999
      %1022 = vmatprep.subr.bf16.mxu0 0
      %1023 = vmatpush1.bf16.msra.mxu0 %v1000
      %1024 = vmatprep.subr.bf16.mxu0 0
      %1025 = vmatpush1.bf16.msra.mxu0 %v1001
      %1026 = vmatprep.subr.bf16.mxu0 0
      %1027 = vmatpush1.bf16.msra.mxu0 0
      %1028 = vmatprep.subr.bf16.mxu0 0
      %1029 = vmatpush1.bf16.msra.mxu0 0
      %1030 = vmatprep.subr.bf16.mxu0 0
      %1031 = vmatpush1.bf16.msra.mxu0 0
      %1032 = vmatprep.subr.bf16.mxu0 0
      %1033 = vmatpush1.bf16.msra.mxu0 0
      %1034 = vmatprep.subr.bf16.mxu0 0
      %1035 = vmatpush1.bf16.msra.mxu0 0
      %1036 = vmatprep.subr.bf16.mxu0 0
      %1037 = vmatpush1.bf16.msra.mxu0 0
      %1038 = vmatprep.subr.bf16.mxu0 0
      %1039 = vmatpush1.bf16.msra.mxu0 0
      %1040 = vmatprep.subr.bf16.mxu0 0
      %1041 = vmatpush1.bf16.msra.mxu0 0
      %1042 = vmatprep.mubr.bf16.mxu0 0
      %1043 = vmatmul.mubr.bf16.gmra.mrb[0].mxu0 %v931
      %v1044 = vpop.f32.mrb[0].mxu0
      %v1045 = vadd.f32 %v960, %v1044
      %v1046 = vpop.f32.mrb[0].mxu0
      %v1047 = vpop.f32.mrb[0].mxu0
      %v1048 = vadd.f32 %v960, %v1047
      %v1049 = vpop.f32.mrb[0].mxu0
      %1050 = vmatprep.mubr.bf16.mxu0 0
      %1051 = vmatmul.mubr.bf16.gmra.mrb[0].mxu0 %v932
      %v1052 = vpop.f32.mrb[0].mxu0
      %v1053 = vadd.f32 %v960, %v1052
      %v1054 = vpop.f32.mrb[0].mxu0
      %v1055 = vpop.f32.mrb[0].mxu0
      %v1056 = vadd.f32 %v960, %v1055
      %v1057 = vpop.f32.mrb[0].mxu0
      %1058 = vmatprep.mubr.bf16.mxu0 0
      %1059 = vmatmul.mubr.bf16.gmra.mrb[0].mxu0 %v933
      %v1060 = vpop.f32.mrb[0].mxu0
      %v1061 = vadd.f32 %v960, %v1060
      %v1062 = vpop.f32.mrb[0].mxu0
      %v1063 = vpop.f32.mrb[0].mxu0
      %v1064 = vadd.f32 %v960, %v1063
      %v1065 = vpop.f32.mrb[0].mxu0
      %1066 = vmatprep.mubr.bf16.mxu0 0
      %1067 = vmatmul.mubr.bf16.gmra.mrb[0].mxu0 %v934
      %v1068 = vpop.f32.mrb[0].mxu0
      %v1069 = vadd.f32 %v960, %v1068
      %v1070 = vpop.f32.mrb[0].mxu0
      %v1071 = vpop.f32.mrb[0].mxu0
      %v1072 = vadd.f32 %v960, %v1071
      %v1073 = vpop.f32.mrb[0].mxu0
      %1074 = vmatprep.mubr.bf16.mxu0 0
      %1075 = vmatmul.mubr.bf16.gmra.mrb[0].mxu0 %v935
      %v1076 = vpop.f32.mrb[0].mxu0
      %v1077 = vadd.f32 %v960, %v1076
      %v1078 = vpop.f32.mrb[0].mxu0
      %v1079 = vpop.f32.mrb[0].mxu0
      %v1080 = vadd.f32 %v960, %v1079
      %v1081 = vpop.f32.mrb[0].mxu0
      %1082 = vmatprep.mubr.bf16.mxu0 0
      %1083 = vmatmul.mubr.bf16.gmra.mrb[0].mxu0 %v936
      %v1084 = vpop.f32.mrb[0].mxu0
      %v1085 = vadd.f32 %v960, %v1084
      %v1086 = vpop.f32.mrb[0].mxu0
      %v1087 = vpop.f32.mrb[0].mxu0
      %v1088 = vadd.f32 %v960, %v1087
      %v1089 = vpop.f32.mrb[0].mxu0
      %1090 = vmatprep.mubr.bf16.mxu0 0
      %1091 = vmatmul.mubr.bf16.gmra.mrb[0].mxu0 %v937
      %v1092 = vpop.f32.mrb[0].mxu0
      %v1093 = vadd.f32 %v960, %v1092
      %v1094 = vpop.f32.mrb[0].mxu0
      %v1095 = vpop.f32.mrb[0].mxu0
      %v1096 = vadd.f32 %v960, %v1095
      %v1097 = vpop.f32.mrb[0].mxu0
      %1098 = vmatprep.mubr.bf16.mxu0 0
      %1099 = vmatmul.mubr.bf16.gmra.mrb[0].mxu0 %v938
      %v1100 = vpop.f32.mrb[0].mxu0
      %v1101 = vadd.f32 %v960, %v1100
      %v1102 = vpop.f32.mrb[0].mxu0
      %v1103 = vpop.f32.mrb[0].mxu0
      %v1104 = vadd.f32 %v960, %v1103
      %v1105 = vpop.f32.mrb[0].mxu0
      %1106 = vdwg.mxu0
      %vm1107 = vcmask 15360
      %1108 = vst.msk [vmem:[%s280] sm:$0xff] %vm1107, %v1045
      %1109 = vst.msk [vmem:[%s280 + $0x8] sm:$0xff] %vm1107, %v1048
      %1110 = vst.msk [vmem:[%s280 + $0x10] sm:$0xff] %vm1107, %v1053
      %1111 = vst.msk [vmem:[%s280 + $0x18] sm:$0xff] %vm1107, %v1056
      %1112 = vst.msk [vmem:[%s280 + $0x20] sm:$0xff] %vm1107, %v1061
      %1113 = vst.msk [vmem:[%s280 + $0x28] sm:$0xff] %vm1107, %v1064
      %1114 = vst.msk [vmem:[%s280 + $0x30] sm:$0xff] %vm1107, %v1069
      %1115 = vst.msk [vmem:[%s280 + $0x38] sm:$0xff] %vm1107, %v1072
      %1116 = vst.msk [vmem:[%s280 + $0x40] sm:$0xff] %vm1107, %v1077
      %1117 = vst.msk [vmem:[%s280 + $0x48] sm:$0xff] %vm1107, %v1080
      %1118 = vst.msk [vmem:[%s280 + $0x50] sm:$0xff] %vm1107, %v1085
      %1119 = vst.msk [vmem:[%s280 + $0x58] sm:$0xff] %vm1107, %v1088
      %1120 = vst.msk [vmem:[%s280 + $0x60] sm:$0xff] %vm1107, %v1093
      %1121 = vst.msk [vmem:[%s280 + $0x68] sm:$0xff] %vm1107, %v1096
      %1122 = vst.msk [vmem:[%s280 + $0x70] sm:$0xff] %vm1107, %v1101
      %1123 = vst.msk [vmem:[%s280 + $0x78] sm:$0xff] %vm1107, %v1104
      %s1124 = smul.u32 16, %s18
      %p1125 = scmp.lt.s32.totalorder %s1124, 31
      %s1126 = scalar_select %p1125, %s1124, 31
      %s1127 = smul.addr %s1126, 8
      %s1128 = scalar_lea.vmem %s7, %s1127
      // Predicated region
      $region49: #{tpu_custom_call.1} parent=47 // pred_check
        %p1129 = pneg %p188
      $region50: #{tpu_custom_call.1} parent=47 // pred_check_branch
        %1131 = sbr.rel (%p1129) target = $region52
      $region51: #{tpu_custom_call.1} parent=47 // pred_region
        %s1132 = smul.u32 16, %s18
      $region52: #{tpu_custom_call.1} parent=47 // pred_fallthru
        _
    $region48: #{tpu_custom_call.1} parent=5 // pred_fallthru
      _
    %p1133 = scmp.le.s32.totalorder 2, %s13
    // Predicated region
    $region53: #{tpu_custom_call.1} parent=5 // pred_check
      %p1134 = pneg %p1133
    $region54: #{tpu_custom_call.1} parent=5 // pred_check_branch
      %1136 = sbr.rel (%p1134) target = $region56
    $region55: #{tpu_custom_call.1} parent=5 // pred_region
      %s1137 = ssub.s32 %s13, 2
      // Predicated region
      $region57: #{tpu_custom_call.1} parent=55 // pred_check
        %p1138 = pneg %p194
      $region58: #{tpu_custom_call.1} parent=55 // pred_check_branch
        %1140 = sbr.rel (%p1138) target = $region60
      $region59: #{tpu_custom_call.1} parent=55 // pred_region
        %s1141 = smul.u32 16, %s19
        %p1142 = scmp.lt.s32.totalorder %s1141, 31
        %s1143 = scalar_select %p1142, %s1141, 31
        %s1144 = smul.addr %s1143, 8
        %s1145 = scalar_lea.vmem %s7, %s1144
      $region60: #{tpu_custom_call.1} parent=55 // pred_fallthru
        _
    $region56: #{tpu_custom_call.1} parent=5 // pred_fallthru
      _
  $region6: #{tpu_custom_call.1} parent=0 // loop_footer
    %s17 = sadd.s32 1, %s13
  $region7: #{tpu_custom_call.1} parent=0 // loop_footer_branch
    %12 = sbr.rel target = $region3
  $region8: #{tpu_custom_call.1} parent=0 // loop_exit
    _

</llo_original>
